<compile_context>
chip_gen: v7x
topology: tpu7x:2x2x1
jax: 0.10.0
libtpu: 0.0.40
codegen_flags: <defaults>
</compile_context>

<pallas_src>
import jax
import jax.numpy as jnp
from jax.experimental import pallas as pl
from jax.experimental.pallas import tpu as pltpu

EPS = 1e-5                     # nn.InstanceNorm1d default
_BLOCK_BUDGET = 4 * 1024 * 1024  # target bytes per (double-buffered) input block


# --------------------------------------------------------------------------
# Kernels
# --------------------------------------------------------------------------
def adain_rows_kernel(shift_ref, scale_ref, x_ref, o_ref):
    """Row-flattened path. One grid step = TR rows of (B*C, L).

    shift_ref/scale_ref: (TR, 1) f32
    x_ref/o_ref:         (TR, L)
    """
    x = x_ref[...].astype(jnp.float32)                       # (TR, L)
    mu = jnp.mean(x, axis=-1, keepdims=True)                 # (TR, 1)
    var = jnp.mean((x - mu) ** 2, axis=-1, keepdims=True)    # biased var
    norm = (x - mu) * jax.lax.rsqrt(var + EPS)               # (TR, L)
    out = shift_ref[...] + scale_ref[...] * norm
    o_ref[...] = out.astype(o_ref.dtype)


def adain_transposed_kernel(shift_ref, scale_ref, x_ref, o_ref):
    """Large-C path. One grid step = one (batch, channel-tile) block.

    shift_ref/scale_ref: (1, TC, 1) f32
    x_ref:               (1, TC, L)
    o_ref:               (1, L, TC)   (lane-dense transposed output)
    """
    x = x_ref[0].astype(jnp.float32)                          # (TC, L)
    mu = jnp.mean(x, axis=-1, keepdims=True)
    var = jnp.mean((x - mu) ** 2, axis=-1, keepdims=True)
    norm = (x - mu) * jax.lax.rsqrt(var + EPS)
    out = shift_ref[0] + scale_ref[0] * norm                  # (TC, L)
    o_ref[0] = out.T.astype(o_ref.dtype)                      # (L, TC) XLU transpose


# --------------------------------------------------------------------------
# Tile-size helpers
# --------------------------------------------------------------------------
def _pick_row_tile(total_rows, row_bytes, sub):
    """Largest row tile that divides total_rows, is a multiple of `sub`
    sublanes, and stays within the per-block byte budget."""
    if total_rows % sub != 0:
        return total_rows                       # full-extent block is always legal
    max_rows = max(sub, (_BLOCK_BUDGET // max(1, row_bytes)) // sub * sub)
    tr = min(total_rows, max_rows)
    while total_rows % tr != 0:
        tr -= sub
    return tr


def _pick_chan_tile(C, row_bytes):
    """Largest multiple of 128 that divides C and stays within the budget."""
    max_c = max(128, (_BLOCK_BUDGET // max(1, row_bytes)) // 128 * 128)
    tc = min(C, max_c)
    while C % tc != 0:
        tc -= 128
    return tc


# --------------------------------------------------------------------------
# Forward wrapper
# --------------------------------------------------------------------------
def adain_forward(x, style, w, bias):
    """x: [B, C, D, D], style: [B, n_style], w: [n_style, 2C], bias: [2C].

    Returns [B, D*D, C] (matches the PyTorch module's .transpose(-1,-2))."""
    B, C, D, _ = x.shape
    L = D * D
    itemsize = x.dtype.itemsize

    # Style Linear hoisted out of the kernel: B*2C outputs, negligible cost.
    y = style.astype(jnp.float32) @ w.astype(jnp.float32) + bias.astype(jnp.float32)
    shift = y[:, :C]                                           # [B, C]  ("mean" chunk)
    scale = y[:, C:]                                           # [B, C]  ("std"  chunk)

    if C % 128 == 0:
        # ---- lane-dense transposed output written directly by the kernel ----
        tc = _pick_chan_tile(C, L * itemsize)
        x_flat = x.reshape(B, C, L)
        shift_c = shift.reshape(B, C, 1)
        scale_c = scale.reshape(B, C, 1)
        return pl.pallas_call(
            adain_transposed_kernel,
            out_shape=jax.ShapeDtypeStruct((B, L, C), x.dtype),
            grid_spec=pltpu.PrefetchScalarGridSpec(
                num_scalar_prefetch=0,
                grid=(B, C // tc),
                in_specs=[
                    pl.BlockSpec((1, tc, 1), lambda b, c: (b, c, 0)),
                    pl.BlockSpec((1, tc, 1), lambda b, c: (b, c, 0)),
                    pl.BlockSpec((1, tc, L), lambda b, c: (b, c, 0)),
                ],
                out_specs=pl.BlockSpec((1, L, tc), lambda b, c: (b, 0, c)),
            ),
            compiler_params=pltpu.CompilerParams(
                dimension_semantics=("parallel", "parallel"),
                vmem_limit_bytes=48 * 1024 * 1024,
            ),
        )(shift_c, scale_c, x_flat)

    # ---- small-C path: flatten (B, C) rows, transpose in the wrapper ----
    rows = B * C
    sub = max(8, 32 // itemsize)                  # 8 sublanes f32, 16 bf16, ...
    tr = _pick_row_tile(rows, L * itemsize, sub)
    x_rows = x.reshape(rows, L)
    shift_r = shift.reshape(rows, 1)
    scale_r = scale.reshape(rows, 1)

    out_rows = pl.pallas_call(
        adain_rows_kernel,
        out_shape=jax.ShapeDtypeStruct((rows, L), x.dtype),
        grid_spec=pltpu.PrefetchScalarGridSpec(
            num_scalar_prefetch=0,
            grid=(rows // tr,),
            in_specs=[
                pl.BlockSpec((tr, 1), lambda r: (r, 0)),
                pl.BlockSpec((tr, 1), lambda r: (r, 0)),
                pl.BlockSpec((tr, L), lambda r: (r, 0)),
            ],
            out_specs=pl.BlockSpec((tr, L), lambda r: (r, 0)),
        ),
        compiler_params=pltpu.CompilerParams(
            dimension_semantics=("parallel",),
            vmem_limit_bytes=48 * 1024 * 1024,
        ),
    )(shift_r, scale_r, x_rows)

    out_cl = out_rows.reshape(B, C, L)
    # Layout permute kept only for C < 128 (a [*, C] kernel output would hit
    # masked partial stores); equivalent to torch .transpose(-1, -2).
    return jnp.transpose(out_cl, (0, 2, 1))                    # [B, L, C]


# --------------------------------------------------------------------------
# Pure-JAX reference mirroring the PyTorch module
# --------------------------------------------------------------------------
def adain_reference(x, style, w, bias):
    B, C, D, _ = x.shape
    y = style @ w + bias                                        # [B, 2C]
    shift = y[:, :C][:, :, None]                                # [B, C, 1]
    scale = y[:, C:][:, :, None]                                # [B, C, 1]
    xf = x.reshape(B, C, D * D).astype(jnp.float32)
    mu = jnp.mean(xf, axis=-1, keepdims=True)
    var = jnp.mean((xf - mu) ** 2, axis=-1, keepdims=True)
    norm = (xf - mu) / jnp.sqrt(var + EPS)
    out = shift + scale * norm
    return jnp.transpose(out, (0, 2, 1)).astype(x.dtype)        # [B, L, C]


# --------------------------------------------------------------------------
def _run_case(key, B, C, D, n_style):
    kx, ks, kw, kb = jax.random.split(key, 4)
    x = jax.random.normal(kx, (B, C, D, D), dtype=jnp.float32)
    style = jax.random.normal(ks, (B, n_style), dtype=jnp.float32)
    bound = 1.0 / jnp.sqrt(n_style)
    w = jax.random.uniform(kw, (n_style, 2 * C), jnp.float32, -bound, bound)
    bias = jax.random.uniform(kb, (2 * C,), jnp.float32, -bound, bound)

    out = jax.block_until_ready(adain_forward(x, style, w, bias))
    ref = adain_reference(x, style, w, bias)
    assert out.shape == (B, D * D, C), out.shape
    assert jnp.allclose(out, ref, atol=1e-5, rtol=1e-5), "mismatch vs reference"


if __name__ == "__main__":
    key = jax.random.PRNGKey(0)
    k1, k2 = jax.random.split(key)

    # Small shapes consistent with AdaIN(n_channels=4, n_style=8), input [2,4,16,16]
    _run_case(k1, B=2, C=4, D=16, n_style=8)          # small-C row-flattened path
    # Lane-dense transposed path (real StyleSwin-like channel width, small spatial)
    _run_case(k2, B=2, C=128, D=4, n_style=8)

    print("KERNEL_OK")
</pallas_src>

<mosaic_0001>
module attributes {stable_mosaic.version = 11 : i64} {
  func.func @adain_rows_kernel(%arg0: i32, %arg1: memref<8x1xf32, #tpu.memory_space<vmem>>, %arg2: memref<8x1xf32, #tpu.memory_space<vmem>>, %arg3: memref<8x256xf32, #tpu.memory_space<vmem>>, %arg4: memref<8x256xf32, #tpu.memory_space<vmem>>) attributes {dimension_semantics = [#tpu.dimension_semantics<parallel>], iteration_bounds = array<i64: 1>, scalar_prefetch = 0 : i64, scratch_operands = 0 : i64, tpu.core_type = #tpu.core_type<tc>, window_params = [{transform_indices = @transform_0, window_bounds = array<i64: 8, 1>}, {transform_indices = @transform_1, window_bounds = array<i64: 8, 1>}, {transform_indices = @transform_2, window_bounds = array<i64: 8, 256>}, {transform_indices = @transform_3, window_bounds = array<i64: 8, 256>}]} {
    %c0 = arith.constant 0 : index
    %c0_0 = arith.constant 0 : index
    %0 = vector.load %arg3[%c0, %c0_0] : memref<8x256xf32, #tpu.memory_space<vmem>>, vector<8x256xf32>
    %cst = arith.constant dense<0.000000e+00> : vector<8xf32>
    %1 = vector.multi_reduction <add>, %0, %cst [1] : vector<8x256xf32> to vector<8xf32>
    %2 = vector.shape_cast %1 : vector<8xf32> to vector<8x1xf32>
    %cst_1 = arith.constant 2.560000e+02 : f32
    %3 = vector.broadcast %cst_1 : f32 to vector<8x1xf32>
    %4 = arith.divf %2, %3 : vector<8x1xf32>
    %5 = vector.broadcast %4 : vector<8x1xf32> to vector<8x256xf32>
    %6 = arith.subf %0, %5 : vector<8x256xf32>
    %7 = arith.mulf %6, %6 : vector<8x256xf32>
    %cst_2 = arith.constant dense<0.000000e+00> : vector<8xf32>
    %8 = vector.multi_reduction <add>, %7, %cst_2 [1] : vector<8x256xf32> to vector<8xf32>
    %9 = vector.shape_cast %8 : vector<8xf32> to vector<8x1xf32>
    %cst_3 = arith.constant 2.560000e+02 : f32
    %10 = vector.broadcast %cst_3 : f32 to vector<8x1xf32>
    %11 = arith.divf %9, %10 : vector<8x1xf32>
    %12 = vector.broadcast %4 : vector<8x1xf32> to vector<8x256xf32>
    %13 = arith.subf %0, %12 : vector<8x256xf32>
    %cst_4 = arith.constant 9.99999974E-6 : f32
    %14 = vector.broadcast %cst_4 : f32 to vector<8x1xf32>
    %15 = arith.addf %11, %14 : vector<8x1xf32>
    %16 = math.rsqrt %15 : vector<8x1xf32>
    %17 = vector.broadcast %16 : vector<8x1xf32> to vector<8x256xf32>
    %18 = arith.mulf %13, %17 : vector<8x256xf32>
    %c0_5 = arith.constant 0 : index
    %c0_6 = arith.constant 0 : index
    %19 = vector.load %arg1[%c0_5, %c0_6] : memref<8x1xf32, #tpu.memory_space<vmem>>, vector<8x1xf32>
    %c0_7 = arith.constant 0 : index
    %c0_8 = arith.constant 0 : index
    %20 = vector.load %arg2[%c0_7, %c0_8] : memref<8x1xf32, #tpu.memory_space<vmem>>, vector<8x1xf32>
    %21 = vector.broadcast %20 : vector<8x1xf32> to vector<8x256xf32>
    %22 = arith.mulf %21, %18 : vector<8x256xf32>
    %23 = vector.broadcast %19 : vector<8x1xf32> to vector<8x256xf32>
    %24 = arith.addf %23, %22 : vector<8x256xf32>
    %c0_9 = arith.constant 0 : index
    %c0_10 = arith.constant 0 : index
    %25 = vector.load %arg4[%c0_9, %c0_10] : memref<8x256xf32, #tpu.memory_space<vmem>>, vector<8x256xf32>
    tpu.vector_store %arg4[%c0_9, %c0_10], %24 {strides = array<i32>} : memref<8x256xf32, #tpu.memory_space<vmem>>, vector<8x256xf32>,
    return
  }
  func.func @transform_0(%arg0: i32) -> (i32, i32) {
    %c0_i32 = arith.constant 0 : i32
    %c0_i32_0 = arith.constant 0 : i32
    return %arg0, %c0_i32 : i32, i32
  }
  func.func @transform_1(%arg0: i32) -> (i32, i32) {
    %c0_i32 = arith.constant 0 : i32
    %c0_i32_0 = arith.constant 0 : i32
    return %arg0, %c0_i32 : i32, i32
  }
  func.func @transform_2(%arg0: i32) -> (i32, i32) {
    %c0_i32 = arith.constant 0 : i32
    %c0_i32_0 = arith.constant 0 : i32
    return %arg0, %c0_i32 : i32, i32
  }
  func.func @transform_3(%arg0: i32) -> (i32, i32) {
    %c0_i32 = arith.constant 0 : i32
    %c0_i32_0 = arith.constant 0 : i32
    return %arg0, %c0_i32 : i32, i32
  }
}

</mosaic_0001>

<llo_original>
// kernel: tpu_custom_call.1
$region0: #{tpu_custom_call.1}
  #allocation0 [shape = 'u32[]', space=smem, size = 0x4, offset = 0x4, fixed_abs, tag = 'smem constant byte address 0x4 - core index']
  #allocation1 [shape = 'u32[144,128]{1,0:T(1,128)}', space=vmem, size = 0x12000, scoped, tag = 'internal scratch']
  %s0 = inlined_call_operand.vmem [shape: f32[8,1], index: 0, kind: input, shape index: {}]
  %s1 = inlined_call_operand.vmem [shape: f32[8,1], index: 1, kind: input, shape index: {}]
  %s2 = inlined_call_operand.vmem [shape: f32[8,256], index: 2, kind: input, shape index: {}]
  %s3 = inlined_call_operand.hbm [shape: f32[8,256], index: 3, kind: output, shape index: {}]
  %s4 = sld [smem:[#allocation0]]
  $region22: #{tpu_custom_call.1} parent=0
    _
  %s6 = ssub.s32 1, %s4
  %s7 = scalar_select 0, %s6, %s4
  $region1: #{tpu_custom_call.1} parent=0
    #allocation2 [shape = 'u8[8192]{0}', space=vmem, size = 0x2000, scoped, tag = 'output window, operand 0, single buffered']
    #allocation3 [shape = 's32[1]{0}', space=sflag, size = 0x4, scoped, tag = 'scoped memory for tpu_custom_call.1']
    %8 = vsyncpa [#allocation3], 0
    // Predicated region
    $region2: #{tpu_custom_call.1} parent=1 // pred_check
      _
    $region3: #{tpu_custom_call.1} parent=1 // pred_check_branch
      %10 = sbr.rel (0) target = $region5
    $region4: #{tpu_custom_call.1} parent=1 // pred_region
      _
    $region5: #{tpu_custom_call.1} parent=1 // pred_fallthru
      _
    // Predicated region
    $region6: #{tpu_custom_call.1} parent=1 // pred_check
      _
    $region7: #{tpu_custom_call.1} parent=1 // pred_check_branch
      %12 = sbr.rel (0) target = $region9
    $region8: #{tpu_custom_call.1} parent=1 // pred_region
      _
    $region9: #{tpu_custom_call.1} parent=1 // pred_fallthru
      _
    // Predicated region
    $region10: #{tpu_custom_call.1} parent=1 // pred_check
      _
    $region11: #{tpu_custom_call.1} parent=1 // pred_check_branch
      %14 = sbr.rel (0) target = $region13
    $region12: #{tpu_custom_call.1} parent=1 // pred_region
      _
    $region13: #{tpu_custom_call.1} parent=1 // pred_fallthru
      _
    %v15 = vld [vmem:[%s2] sm:$0xff]
    %v16 = vld [vmem:[%s2 + $0x8] sm:$0xff]
    %v17 = vadd.f32 %v15, %v16
    %18 = vadd.xlane.f32.xlu0 %v17
    %v19 = vpop.xlane.xlu0 %18
    %v20 = vrcp.pop 256.0
    %v21 = vmul.f32 %v19, %v20
    %v22 = vsub.f32 %v15, %v21
    %v23 = vsub.f32 %v16, %v21
    %v24 = vmul.f32 %v22, %v22
    %v25 = vmul.f32 %v23, %v23
    %v26 = vadd.f32 %v24, %v25
    %27 = vadd.xlane.f32.xlu0 %v26
    %v28 = vpop.xlane.xlu0 %27
    %v29 = vmul.f32 %v28, %v20
    %v30 = vadd.f32 %v29, 1e-05
    %v31 = vrsqrt.pop %v30
    %v32 = vmul.f32 %v22, %v31
    %v33 = vmul.f32 %v23, %v31
    %v34 = vld [vmem:[%s0] sm:$0xff]
    %v35 = vld [vmem:[%s1] sm:$0xff]
    %37 = vset.pattern.permute.xlu0 0
    %38 = vperm.xlu0 %37, %v35
    %v39 = vpop.permute.xlu0 %38
    %v41 = vmul.f32 %v39, %v32
    %v42 = vmul.f32 %v39, %v33
    %44 = vset.pattern.permute.xlu0 0
    %45 = vperm.xlu0 %44, %v34
    %v46 = vpop.permute.xlu0 %45
    %v48 = vadd.f32 %v46, %v41
    %v49 = vadd.f32 %v46, %v42
    %50 = vst [vmem:[#allocation2] sm:$0xff] %v48
    %51 = vst [vmem:[#allocation2 + $0x8] sm:$0xff] %v49
    // Predicated region
    $region14: #{tpu_custom_call.1} parent=1 // pred_check
      _
    $region15: #{tpu_custom_call.1} parent=1 // pred_check_branch
      %53 = sbr.rel (0) target = $region17
    $region16: #{tpu_custom_call.1} parent=1 // pred_region
      %s55 = ssub.s32 256, 256
      %56 = vsyncadd [#allocation3], %s55
      %s58 = sshll.u32 [#allocation2], 4
      %s59 = int_to_ptr.vmem [resolvable:$true] %s58
      %61 = dma.vmem_to_hbm [thread:$0]  %s59, 256, %s3, [#allocation3]
    $region17: #{tpu_custom_call.1} parent=1 // pred_fallthru
      _
    // Predicated region
    $region18: #{tpu_custom_call.1} parent=1 // pred_check
      _
    $region19: #{tpu_custom_call.1} parent=1 // pred_check_branch
      %63 = sbr.rel (0) target = $region21
    $region20: #{tpu_custom_call.1} parent=1 // pred_region
      %64 = dma.done [#allocation3], 256
    $region21: #{tpu_custom_call.1} parent=1 // pred_fallthru
      _
    %65 = vsyncpa [#allocation3], 1

</llo_original>
